<compile_context>
chip_gen: v6e
topology: v6e:2x2x1
jax: 0.10.0
libtpu: 0.0.40
codegen_flags: <defaults>
</compile_context>

<pallas_src>
import functools

import jax
import jax.numpy as jnp
from jax.experimental import pallas as pl
from jax.experimental.pallas import tpu as pltpu


def _round_up(x, m):
    return (x + m - 1) // m * m


def switch_gate_kernel(x_ref, w_ref, b_ref, o_ref, *, topk, epsilon, capacity):
    # x_ref: (D, T)   native dtype, tokens on the lane axis
    # w_ref: (Ep, D)  native dtype, padded expert rows are zero
    # b_ref: (Ep, 1)  f32, padded expert rows hold -1e30
    # o_ref: (Ep, T)
    x = x_ref[...]
    w = w_ref[...]
    b = b_ref[...]

    # Router linear on the MXU with f32 accumulation; logits_T is (Ep, T).
    logits = jnp.dot(w, x, preferred_element_type=jnp.float32) + b

    # Softmax numerator over experts (sublane axis). Padded experts have logits
    # ~= -1e30 -> exp underflows to exactly 0 and never influences sums/top-k.
    m = jnp.max(logits, axis=0, keepdims=True)      # (1, T)
    e = jnp.exp(logits - m)                          # (Ep, T)
    sum_e = jnp.sum(e, axis=0, keepdims=True)        # (1, T)

    # Top-k over experts directly on the logits (softmax is monotone -> identical
    # expert set); first occurrence wins ties, matching jax.lax.top_k. Iteration 0
    # reuses the softmax max, saving one XLU reduction per tile.
    Ep = logits.shape[0]
    iota = jax.lax.broadcasted_iota(jnp.int32, logits.shape, 0)  # hoisted once
    remaining = logits
    mask = jnp.zeros_like(e)
    cur_max = m
    for t in range(topk):
        if t > 0:
            cur_max = jnp.max(remaining, axis=0, keepdims=True)
        sel = remaining >= cur_max
        idx = jnp.min(jnp.where(sel, iota, Ep), axis=0, keepdims=True)
        onehot = iota == idx
        mask = mask + onehot.astype(mask.dtype)
        remaining = jnp.where(onehot, -jnp.inf, remaining)

    # Fused renormalization (algebraically identical to the reference):
    #   gate = e / sum_e
    #   out  = gate*mask / (sum(gate*mask) + eps) * capacity
    #        = e*mask * capacity / (sum(e*mask) + eps*sum_e)
    # Single exact division on a (1, T) column -> negligible cost, no approx drift.
    em = e * mask
    denom = jnp.sum(em, axis=0, keepdims=True) + epsilon * sum_e
    scale = capacity / denom
    o_ref[...] = (em * scale).astype(o_ref.dtype)


def switch_gate(x, weight, bias, *, topk, epsilon, capacity, tile_tokens=2048):
    B, S, D = x.shape
    E = weight.shape[0]
    assert topk <= E, "topk must be <= number of experts"
    N = B * S

    # Tokens live on the lane axis -> token tile must be a multiple of 128.
    # Large tiles amortize the ~0.35us per-grid-step overhead; when N is large,
    # force at least 2 grid steps so the "parallel" axis shards across both
    # TensorCores on v7x.
    if N <= tile_tokens:
        tile = _round_up(N, 128)
    else:
        tile = min(tile_tokens, _round_up(pl.cdiv(N, 2), 128))
    Np = _round_up(N, tile)

    # Experts live on the sublane axis -> pad E up to the f32 sublane multiple (8).
    Ep = _round_up(E, 8)

    # Token-major -> feature-major: one XLA transpose pass over x; everything
    # downstream (post-matmul VPU/EUP/XLU work and the (E, N) output) is narrow.
    x_t = jnp.pad(x.reshape(N, D).T, ((0, 0), (0, Np - N)))  # (D, Np)

    w_p = weight                                             # (Ep, D)
    b_p = bias.astype(jnp.float32).reshape(E, 1)             # (Ep, 1)
    if Ep != E:
        w_p = jnp.pad(weight, ((0, Ep - E), (0, 0)))
        # Padded experts get bias = -1e30 so softmax gives them ~0 probability and
        # top-k never selects them (topk <= E).
        b_p = jnp.concatenate(
            [b_p, jnp.full((Ep - E, 1), -1e30, dtype=jnp.float32)], axis=0
        )

    out = pl.pallas_call(
        functools.partial(
            switch_gate_kernel, topk=topk, epsilon=epsilon, capacity=capacity
        ),
        out_shape=jax.ShapeDtypeStruct((Ep, Np), x.dtype),
        grid_spec=pltpu.PrefetchScalarGridSpec(
            num_scalar_prefetch=0,
            grid=(Np // tile,),
            in_specs=[
                pl.BlockSpec((D, tile), lambda i: (0, i)),   # x (tokens on lanes)
                pl.BlockSpec((Ep, D), lambda i: (0, 0)),     # router weight
                pl.BlockSpec((Ep, 1), lambda i: (0, 0)),     # bias (padded = -1e30)
            ],
            out_specs=pl.BlockSpec((Ep, tile), lambda i: (0, i)),
        ),
        # Per-step VMEM footprint is well under a MiB at these shapes, so the
        # default scoped-VMEM limit is ample; no explicit vmem_limit_bytes.
        compiler_params=pltpu.CompilerParams(
            dimension_semantics=("parallel",),
        ),
    )(x_t, w_p, b_p)

    # (Ep, Np) -> drop padding -> (N, E) -> (B, S, E). E rows is a tiny slab.
    return out[:E, :N].T.reshape(B, S, E)


def reference_switch_gate(x, weight, bias, *, topk, epsilon, capacity):
    logits = jnp.einsum("bsd,ed->bse", x, weight) + bias
    gate = jax.nn.softmax(logits, axis=-1)
    _, idx = jax.lax.top_k(gate, topk)
    mask = jnp.sum(jax.nn.one_hot(idx, gate.shape[-1], dtype=gate.dtype), axis=-2)
    masked = gate * mask
    denom = jnp.sum(masked, axis=-1, keepdims=True) + epsilon
    return masked / denom * capacity


if __name__ == "__main__":
    # Config-implied small shapes:
    #   transformer_dim = 32, attn_n_experts = 8, attn_topk = 2,
    #   capacity = 1.25, epsilon = 1e-6, batch = 2, seq = 8
    B, S, D, E = 2, 8, 32, 8
    TOPK, CAPACITY, EPSILON = 2, 1.25, 1e-6

    key = jax.random.PRNGKey(0)
    kx, kw = jax.random.split(key)

    x = jax.random.normal(kx, (B, S, D), dtype=jnp.float32)

    # Deterministic xavier_normal_-style init for weight (E, D); bias zeroed.
    std = (2.0 / (D + E)) ** 0.5
    weight = jax.random.normal(kw, (E, D), dtype=jnp.float32) * std
    bias = jnp.zeros((E,), dtype=jnp.float32)

    out = switch_gate(
        x, weight, bias, topk=TOPK, epsilon=EPSILON, capacity=CAPACITY
    )
    out = jax.block_until_ready(out)

    ref = reference_switch_gate(
        x, weight, bias, topk=TOPK, epsilon=EPSILON, capacity=CAPACITY
    )
    assert out.shape == (B, S, E)
    # Single exact division in the kernel -> only exp/matmul rounding differences
    # vs the XLA reference.
    assert jnp.allclose(out, ref, atol=1e-4, rtol=1e-4), "mismatch vs reference"

    print("KERNEL_OK")
</pallas_src>

<mosaic_0001>
module attributes {stable_mosaic.version = 11 : i64} {
  func.func @switch_gate_kernel(%arg0: i32, %arg1: memref<32x128xf32, #tpu.memory_space<vmem>>, %arg2: memref<8x32xf32, #tpu.memory_space<vmem>>, %arg3: memref<8x1xf32, #tpu.memory_space<vmem>>, %arg4: memref<8x128xf32, #tpu.memory_space<vmem>>) attributes {dimension_semantics = [#tpu.dimension_semantics<parallel>], iteration_bounds = array<i64: 1>, scalar_prefetch = 0 : i64, scratch_operands = 0 : i64, tpu.core_type = #tpu.core_type<tc>, window_params = [{transform_indices = @transform_0, window_bounds = array<i64: 32, 128>}, {pipeline_mode = #tpu.pipeline_mode<synchronous>, transform_indices = @transform_1, window_bounds = array<i64: 8, 32>}, {pipeline_mode = #tpu.pipeline_mode<synchronous>, transform_indices = @transform_2, window_bounds = array<i64: 8, 1>}, {transform_indices = @transform_3, window_bounds = array<i64: 8, 128>}]} {
    %c0 = arith.constant 0 : index
    %c0_0 = arith.constant 0 : index
    %0 = vector.load %arg1[%c0, %c0_0] : memref<32x128xf32, #tpu.memory_space<vmem>>, vector<32x128xf32>
    %c0_1 = arith.constant 0 : index
    %c0_2 = arith.constant 0 : index
    %1 = vector.load %arg2[%c0_1, %c0_2] : memref<8x32xf32, #tpu.memory_space<vmem>>, vector<8x32xf32>
    %c0_3 = arith.constant 0 : index
    %c0_4 = arith.constant 0 : index
    %2 = vector.load %arg3[%c0_3, %c0_4] : memref<8x1xf32, #tpu.memory_space<vmem>>, vector<8x1xf32>
    %cst = arith.constant dense<0.000000e+00> : vector<8x128xf32>
    %3 = tpu.matmul %1, %0, %cst {dimension_numbers = #tpu.dot_dimension_numbers<[1], [0], [0], [1], [0, 0, 1, 1], [], []>} : vector<8x32xf32>, vector<32x128xf32>, vector<8x128xf32> -> vector<8x128xf32>
    %4 = vector.broadcast %2 : vector<8x1xf32> to vector<8x128xf32>
    %5 = arith.addf %3, %4 : vector<8x128xf32>
    %cst_5 = arith.constant dense<0xFF800000> : vector<128xf32>
    %6 = vector.multi_reduction <maximumf>, %5, %cst_5 [0] : vector<8x128xf32> to vector<128xf32>
    %7 = vector.shape_cast %6 : vector<128xf32> to vector<1x128xf32>
    %8 = vector.broadcast %7 : vector<1x128xf32> to vector<8x128xf32>
    %9 = arith.subf %5, %8 : vector<8x128xf32>
    %10 = math.exp %9 : vector<8x128xf32>
    %cst_6 = arith.constant dense<0.000000e+00> : vector<128xf32>
    %11 = vector.multi_reduction <add>, %10, %cst_6 [0] : vector<8x128xf32> to vector<128xf32>
    %12 = vector.shape_cast %11 : vector<128xf32> to vector<1x128xf32>
    %13 = tpu.iota {dimensions = array<i32: 0>} : vector<8x128xi32>
    %cst_7 = arith.constant 0.000000e+00 : f32
    %14 = vector.broadcast %cst_7 : f32 to vector<8x128xf32>
    %15 = vector.broadcast %7 : vector<1x128xf32> to vector<8x128xf32>
    %16 = arith.cmpf oge, %5, %15 : vector<8x128xf32>
    %c8_i32 = arith.constant 8 : i32
    %17 = vector.broadcast %c8_i32 : i32 to vector<8x128xi32>
    %18 = arith.select %16, %13, %17 : vector<8x128xi1>, vector<8x128xi32>
    %cst_8 = arith.constant dense<2147483647> : vector<128xi32>
    %19 = vector.multi_reduction <minsi>, %18, %cst_8 [0] : vector<8x128xi32> to vector<128xi32>
    %20 = vector.shape_cast %19 : vector<128xi32> to vector<1x128xi32>
    %21 = vector.broadcast %20 : vector<1x128xi32> to vector<8x128xi32>
    %22 = arith.cmpi eq, %13, %21 : vector<8x128xi32>
    %23 = arith.extui %22 : vector<8x128xi1> to vector<8x128xi32>
    %24 = arith.sitofp %23 : vector<8x128xi32> to vector<8x128xf32>
    %25 = arith.addf %14, %24 : vector<8x128xf32>
    %cst_9 = arith.constant 0xFF800000 : f32
    %26 = vector.broadcast %cst_9 : f32 to vector<8x128xf32>
    %27 = arith.select %22, %26, %5 : vector<8x128xi1>, vector<8x128xf32>
    %cst_10 = arith.constant dense<0xFF800000> : vector<128xf32>
    %28 = vector.multi_reduction <maximumf>, %27, %cst_10 [0] : vector<8x128xf32> to vector<128xf32>
    %29 = vector.shape_cast %28 : vector<128xf32> to vector<1x128xf32>
    %30 = vector.broadcast %29 : vector<1x128xf32> to vector<8x128xf32>
    %31 = arith.cmpf oge, %27, %30 : vector<8x128xf32>
    %c8_i32_11 = arith.constant 8 : i32
    %32 = vector.broadcast %c8_i32_11 : i32 to vector<8x128xi32>
    %33 = arith.select %31, %13, %32 : vector<8x128xi1>, vector<8x128xi32>
    %cst_12 = arith.constant dense<2147483647> : vector<128xi32>
    %34 = vector.multi_reduction <minsi>, %33, %cst_12 [0] : vector<8x128xi32> to vector<128xi32>
    %35 = vector.shape_cast %34 : vector<128xi32> to vector<1x128xi32>
    %36 = vector.broadcast %35 : vector<1x128xi32> to vector<8x128xi32>
    %37 = arith.cmpi eq, %13, %36 : vector<8x128xi32>
    %38 = arith.extui %37 : vector<8x128xi1> to vector<8x128xi32>
    %39 = arith.sitofp %38 : vector<8x128xi32> to vector<8x128xf32>
    %40 = arith.addf %25, %39 : vector<8x128xf32>
    %41 = arith.mulf %10, %40 : vector<8x128xf32>
    %cst_13 = arith.constant dense<0.000000e+00> : vector<128xf32>
    %42 = vector.multi_reduction <add>, %41, %cst_13 [0] : vector<8x128xf32> to vector<128xf32>
    %43 = vector.shape_cast %42 : vector<128xf32> to vector<1x128xf32>
    %cst_14 = arith.constant 9.99999997E-7 : f32
    %44 = vector.broadcast %cst_14 : f32 to vector<1x128xf32>
    %45 = arith.mulf %44, %12 : vector<1x128xf32>
    %46 = arith.addf %43, %45 : vector<1x128xf32>
    %cst_15 = arith.constant 1.250000e+00 : f32
    %47 = vector.broadcast %cst_15 : f32 to vector<1x128xf32>
    %48 = arith.divf %47, %46 : vector<1x128xf32>
    %49 = vector.broadcast %48 : vector<1x128xf32> to vector<8x128xf32>
    %50 = arith.mulf %41, %49 : vector<8x128xf32>
    %c0_16 = arith.constant 0 : index
    %c0_17 = arith.constant 0 : index
    %51 = vector.load %arg4[%c0_16, %c0_17] : memref<8x128xf32, #tpu.memory_space<vmem>>, vector<8x128xf32>
    tpu.vector_store %arg4[%c0_16, %c0_17], %50 {strides = array<i32>} : memref<8x128xf32, #tpu.memory_space<vmem>>, vector<8x128xf32>,
    return
  }
  func.func @transform_0(%arg0: i32) -> (i32, i32) {
    %c0_i32 = arith.constant 0 : i32
    %c0_i32_0 = arith.constant 0 : i32
    return %c0_i32, %arg0 : i32, i32
  }
  func.func @transform_1(%arg0: i32) -> (i32, i32) {
    %c0_i32 = arith.constant 0 : i32
    %c0_i32_0 = arith.constant 0 : i32
    %c0_i32_1 = arith.constant 0 : i32
    return %c0_i32, %c0_i32_0 : i32, i32
  }
  func.func @transform_2(%arg0: i32) -> (i32, i32) {
    %c0_i32 = arith.constant 0 : i32
    %c0_i32_0 = arith.constant 0 : i32
    %c0_i32_1 = arith.constant 0 : i32
    return %c0_i32, %c0_i32_0 : i32, i32
  }
  func.func @transform_3(%arg0: i32) -> (i32, i32) {
    %c0_i32 = arith.constant 0 : i32
    %c0_i32_0 = arith.constant 0 : i32
    return %c0_i32, %arg0 : i32, i32
  }
}

</mosaic_0001>

<llo_original>
// kernel: tpu_custom_call.1
$region0: #{tpu_custom_call.1}
  #allocation0 [shape = 'u32[]', space=smem, size = 0x4, offset = 0x4, fixed_abs, tag = 'smem constant byte address 0x4 - core index']
  #allocation1 [shape = 'u32[144,128]{1,0:T(1,128)}', space=vmem, size = 0x12000, scoped, tag = 'internal scratch']
  %s0 = inlined_call_operand.hbm [shape: f32[32,128], index: 0, kind: input, shape index: {}]
  %s1 = inlined_call_operand.vmem [shape: f32[8,32], index: 1, kind: input, shape index: {}]
  %s2 = inlined_call_operand.vmem [shape: f32[8,1], index: 2, kind: input, shape index: {}]
  %s3 = inlined_call_operand.hbm [shape: f32[8,128], index: 3, kind: output, shape index: {}]
  %s4 = sld [smem:[#allocation0]]
  $region26: #{tpu_custom_call.1} parent=0
    _
  %s6 = ssub.s32 1, %s4
  %s7 = scalar_select 0, %s6, %s4
  $region1: #{tpu_custom_call.1} parent=0
    #allocation2 [shape = 'u8[16384]{0}', space=vmem, size = 0x4000, scoped, tag = 'input window, operand 0, single buffered']
    #allocation3 [shape = 's32[1]{0}', space=sflag, size = 0x4, scoped, tag = 'scoped memory for tpu_custom_call.1']
    #allocation4 [shape = 's32[1]{0}', space=sflag, size = 0x4, scoped, tag = 'scoped memory for tpu_custom_call.1']
    #allocation5 [shape = 'u8[4096]{0}', space=vmem, size = 0x1000, scoped, tag = 'output window, operand 0, single buffered']
    %8 = vsyncpa [#allocation3], 0
    %9 = vsyncpa [#allocation4], 0
    // Predicated region
    $region2: #{tpu_custom_call.1} parent=1 // pred_check
      _
    $region3: #{tpu_custom_call.1} parent=1 // pred_check_branch
      %11 = sbr.rel (0) target = $region5
    $region4: #{tpu_custom_call.1} parent=1 // pred_region
      %s13 = ssub.s32 512, 512
      %14 = vsyncadd [#allocation3], %s13
      %s15 = sshll.u32 [#allocation2], 4
      %s16 = int_to_ptr.vmem [resolvable:$true] %s15
      %21 = dma.hbm_to_vmem [thread:$0]  %s0, 512, %s16, [#allocation3], 128, 128, 8
    $region5: #{tpu_custom_call.1} parent=1 // pred_fallthru
      _
    // Predicated region
    $region6: #{tpu_custom_call.1} parent=1 // pred_check
      _
    $region7: #{tpu_custom_call.1} parent=1 // pred_check_branch
      %23 = sbr.rel (0) target = $region9
    $region8: #{tpu_custom_call.1} parent=1 // pred_region
      _
    $region9: #{tpu_custom_call.1} parent=1 // pred_fallthru
      _
    // Predicated region
    $region10: #{tpu_custom_call.1} parent=1 // pred_check
      _
    $region11: #{tpu_custom_call.1} parent=1 // pred_check_branch
      %25 = sbr.rel (0) target = $region13
    $region12: #{tpu_custom_call.1} parent=1 // pred_region
      _
    $region13: #{tpu_custom_call.1} parent=1 // pred_fallthru
      _
    // Predicated region
    $region14: #{tpu_custom_call.1} parent=1 // pred_check
      _
    $region15: #{tpu_custom_call.1} parent=1 // pred_check_branch
      %27 = sbr.rel (0) target = $region17
    $region16: #{tpu_custom_call.1} parent=1 // pred_region
      %28 = dma.done [#allocation3], 512
    $region17: #{tpu_custom_call.1} parent=1 // pred_fallthru
      _
    %v29 = vld [vmem:[#allocation2] sm:$0xff]
    %v30 = vld [vmem:[#allocation2 + $0x8] sm:$0xff]
    %v31 = vld [vmem:[#allocation2 + $0x10] sm:$0xff]
    %v32 = vld [vmem:[#allocation2 + $0x18] sm:$0xff]
    %v33 = vld [vmem:[%s1] sm:$0xff]
    %v34 = vld [vmem:[%s2] sm:$0xff]
    %36 = vset.pattern.permute.xlu0 0
    %37 = vperm.xlu0 %36, %v34
    %v38 = vpop.permute.xlu0 %37
    %vm40 = vcmask 261120
    %v42 = vsel %vm40, %v33, 0
    %44 = vmatprep.subr.mxu0 0.0
    %45 = vmatpush1.msra.mxu0 0.0
    %46 = vmatprep.subr.mxu0 0.0
    %47 = vmatpush1.msra.mxu0 0.0
    %48 = vmatprep.subr.mxu0 0.0
    %49 = vmatpush1.msra.mxu0 0.0
    %50 = vmatprep.subr.mxu0 0.0
    %51 = vmatpush1.msra.mxu0 0.0
    %52 = vmatprep.subr.mxu0 0.0
    %53 = vmatpush1.msra.mxu0 0.0
    %54 = vmatprep.subr.mxu0 0.0
    %55 = vmatpush1.msra.mxu0 0.0
    %56 = vmatprep.subr.mxu0 0.0
    %57 = vmatpush1.msra.mxu0 0.0
    %58 = vmatprep.subr.mxu0 0.0
    %59 = vmatpush1.msra.mxu0 0.0
    %60 = vmatprep.subr.mxu0 0.0
    %61 = vmatpush1.msra.mxu0 0.0
    %62 = vmatprep.subr.mxu0 0.0
    %63 = vmatpush1.msra.mxu0 0.0
    %64 = vmatprep.subr.mxu0 0.0
    %65 = vmatpush1.msra.mxu0 0.0
    %66 = vmatprep.subr.mxu0 0.0
    %67 = vmatpush1.msra.mxu0 0.0
    %68 = vmatprep.subr.mxu0 0.0
    %69 = vmatpush1.msra.mxu0 %v32
    %70 = vmatprep.subr.mxu0 0.0
    %71 = vmatpush1.msra.mxu0 %v31
    %72 = vmatprep.subr.mxu0 0.0
    %73 = vmatpush1.msra.mxu0 %v30
    %74 = vmatprep.subr.mxu0 0.0
    %75 = vmatpush1.msra.mxu0 %v29
    %76 = vmatprep.subr.mxu0 0.0
    %77 = vmatpush2.msra.mxu0 0.0
    %78 = vmatprep.subr.mxu0 0.0
    %79 = vmatpush2.msra.mxu0 0.0
    %80 = vmatprep.subr.mxu0 0.0
    %81 = vmatpush2.msra.mxu0 0.0
    %82 = vmatprep.subr.mxu0 0.0
    %83 = vmatpush2.msra.mxu0 0.0
    %84 = vmatprep.subr.mxu0 0.0
    %85 = vmatpush2.msra.mxu0 0.0
    %86 = vmatprep.subr.mxu0 0.0
    %87 = vmatpush2.msra.mxu0 0.0
    %88 = vmatprep.subr.mxu0 0.0
    %89 = vmatpush2.msra.mxu0 0.0
    %90 = vmatprep.subr.mxu0 0.0
    %91 = vmatpush2.msra.mxu0 0.0
    %92 = vmatprep.subr.mxu0 0.0
    %93 = vmatpush2.msra.mxu0 0.0
    %94 = vmatprep.subr.mxu0 0.0
    %95 = vmatpush2.msra.mxu0 0.0
    %96 = vmatprep.subr.mxu0 0.0
    %97 = vmatpush2.msra.mxu0 0.0
    %98 = vmatprep.subr.mxu0 0.0
    %99 = vmatpush2.msra.mxu0 0.0
    %100 = vmatprep.subr.mxu0 0.0
    %101 = vmatpush2.msra.mxu0 0.0
    %102 = vmatprep.subr.mxu0 0.0
    %103 = vmatpush2.msra.mxu0 0.0
    %104 = vmatprep.subr.mxu0 0.0
    %105 = vmatpush2.msra.mxu0 0.0
    %106 = vmatprep.subr.mxu0 0.0
    %107 = vmatpush2.msra.mxu0 0.0
    %108 = vmatprep.mubr.f32.mxu0 0.0
    %109 = vmatmul.mubr.f32.gmra.mxu0 %v42
    %v110 = vpop.f32.mrf.mxu0
    %v111 = vadd.f32 %v38, %v110
    %v112 = vpop.f32.mrf.mxu0
    %113 = vdwg.mxu0
    %v114 = vrot.slane %v111, 4
    %v115 = vmax.f32 %v111, %v114
    %v116 = vrot.slane %v115, 2
    %v117 = vmax.f32 %v115, %v116
    %v118 = vrot.slane %v117, 1
    %v119 = vmax.f32 %v117, %v118
    %v120 = vsub.f32 %v111, %v119
    %v121 = vmul.f32 %v120, 1.442695
    %v122 = vpow.pop %v121
    %v123 = vrot.slane %v122, 4
    %v124 = vadd.f32 %v122, %v123
    %v125 = vrot.slane %v124, 2
    %v126 = vadd.f32 %v124, %v125
    %v127 = vrot.slane %v126, 1
    %v128 = vadd.f32 %v126, %v127
    %v129 = vlaneseq
    %v130 = vshrl.u32 %v129, 7
    %vm131 = vcmp.ge.f32.partialorder %v111, %v119
    %v132 = vsel %vm131, %v130, 8
    %v133 = vrot.slane %v132, 4
    %vm134 = vcmp.lt.s32.totalorder %v132, %v133
    %v135 = vsel %vm134, %v132, %v133
    %v136 = vrot.slane %v135, 2
    %vm137 = vcmp.lt.s32.totalorder %v135, %v136
    %v138 = vsel %vm137, %v135, %v136
    %v139 = vrot.slane %v138, 1
    %vm140 = vcmp.lt.s32.totalorder %v138, %v139
    %v141 = vsel %vm140, %v138, %v139
    %vm142 = vcmp.eq.s32.totalorder %v130, %v141
    %v143 = vsel %vm142, 1, 0
    %v144 = vcvt.s32.f32 %v143
    %v145 = vadd.f32 %v144, 0.0
    %v146 = vsel %vm142, -inf, %v111
    %v147 = vrot.slane %v146, 4
    %v148 = vmax.f32 %v146, %v147
    %v149 = vrot.slane %v148, 2
    %v150 = vmax.f32 %v148, %v149
    %v151 = vrot.slane %v150, 1
    %v152 = vmax.f32 %v150, %v151
    %vm153 = vcmp.ge.f32.partialorder %v146, %v152
    %v154 = vsel %vm153, %v130, 8
    %v155 = vrot.slane %v154, 4
    %vm156 = vcmp.lt.s32.totalorder %v154, %v155
    %v157 = vsel %vm156, %v154, %v155
    %v158 = vrot.slane %v157, 2
    %vm159 = vcmp.lt.s32.totalorder %v157, %v158
    %v160 = vsel %vm159, %v157, %v158
    %v161 = vrot.slane %v160, 1
    %vm162 = vcmp.lt.s32.totalorder %v160, %v161
    %v163 = vsel %vm162, %v160, %v161
    %vm164 = vcmp.eq.s32.totalorder %v130, %v163
    %v165 = vsel %vm164, 1, 0
    %v166 = vcvt.s32.f32 %v165
    %v167 = vadd.f32 %v145, %v166
    %v168 = vmul.f32 %v122, %v167
    %v169 = vrot.slane %v168, 4
    %v170 = vadd.f32 %v168, %v169
    %v171 = vrot.slane %v170, 2
    %v172 = vadd.f32 %v170, %v171
    %v173 = vrot.slane %v172, 1
    %v174 = vadd.f32 %v172, %v173
    %v175 = vmul.f32 %v128, 1e-06
    %v176 = vadd.f32 %v174, %v175
    %v177 = vrcp.pop %v176
    %v178 = vmul.f32 1.25, %v177
    %v179 = vmul.f32 %v168, %v178
    %180 = vst [vmem:[#allocation5] sm:$0xff] %v179
    // Predicated region
    $region18: #{tpu_custom_call.1} parent=1 // pred_check
      _
    $region19: #{tpu_custom_call.1} parent=1 // pred_check_branch
      %182 = sbr.rel (0) target = $region21
    $region20: #{tpu_custom_call.1} parent=1 // pred_region
      %s184 = ssub.s32 128, 128
      %185 = vsyncadd [#allocation4], %s184
      %s187 = sshll.u32 [#allocation5], 4
      %s188 = int_to_ptr.vmem [resolvable:$true] %s187
      %190 = dma.vmem_to_hbm [thread:$0]  %s188, 128, %s3, [#allocation4]
    $region21: #{tpu_custom_call.1} parent=1 // pred_fallthru
      _
    // Predicated region
    $region22: #{tpu_custom_call.1} parent=1 // pred_check
      _
    $region23: #{tpu_custom_call.1} parent=1 // pred_check_branch
      %192 = sbr.rel (0) target = $region25
    $region24: #{tpu_custom_call.1} parent=1 // pred_region
      %193 = dma.done [#allocation4], 128
    $region25: #{tpu_custom_call.1} parent=1 // pred_fallthru
      _
    %194 = vsyncpa [#allocation3], 1
    %195 = vsyncpa [#allocation4], 1

</llo_original>
